<compile_context>
chip_gen: v7x
topology: tpu7x:2x2x1
jax: 0.10.0
libtpu: 0.0.40
codegen_flags: <defaults>
</compile_context>

<pallas_src>
import jax
import jax.numpy as jnp
from jax.experimental import pallas as pl
from jax.experimental.pallas import tpu as pltpu


# ---------------------------------------------------------------------------
# VMEM budgeting (generation-aware).
# ---------------------------------------------------------------------------
def _vmem_budget():
    """Returns (per_block_budget_bytes, vmem_limit_bytes).

    We request up to half of physical VMEM as the scoped limit (capped at
    64 MiB) and give each As block a quarter of that, so the double-buffered
    As stream uses at most half the scoped limit; the rest is headroom for
    the x / out blocks, the f32 accumulator and compiler scratch.
    """
    default_phys = 64 * 1024 * 1024  # conservative: v7x per-TensorCore VMEM
    try:
        phys = int(pltpu.get_tpu_info().vmem_capacity_bytes)
        if phys <= 0:
            phys = default_phys
    except Exception:
        phys = default_phys
    vmem_limit = min(phys // 2, 64 * 1024 * 1024)   # 64 MiB v5e/v6e, 32 MiB v7x
    block_budget = vmem_limit // 4                  # 16 MiB v5e/v6e, 8 MiB v7x
    return block_budget, vmem_limit


# ---------------------------------------------------------------------------
# Tile-size policy.
# ---------------------------------------------------------------------------
def _choose_tiles(bz, oDim, xDim, itemsize, block_budget):
    """Pick (tb, to, tx) block sizes for x:(bz,xDim), As:(bz,oDim,xDim)."""
    SUB = {4: 8, 2: 16, 1: 32}.get(itemsize, 8)   # dtype-aware sublane multiple
    LANE = 128

    def cdiv(a, b):
        return -(-a // b)

    def pad_up(v, m):
        return cdiv(v, m) * m

    def rdown(v, m):
        return max(m, (v // m) * m)

    def as_block_bytes(tb, to, tx):
        # Padded VMEM footprint of one As block (sublane x lane tiling).
        return tb * pad_up(to, SUB) * pad_up(tx, LANE) * itemsize

    tb_min = bz if bz <= SUB else SUB

    # Path 1: whole (oDim, xDim) slab per batch row fits -> only tile batch.
    if as_block_bytes(tb_min, oDim, xDim) <= block_budget:
        per_row = as_block_bytes(1, oDim, xDim)
        tb = min(bz, block_budget // per_row)
        if bz <= SUB:
            tb = bz
        else:
            tb = rdown(tb, SUB)
            # Keep >= min(8, cdiv(bz, SUB)) batch grid steps so the grid never
            # collapses to one step (megacore sharding + DMA pipelining).
            target_steps = min(8, cdiv(bz, SUB))
            if target_steps > 1:
                tb = min(tb, rdown(cdiv(bz, target_steps), SUB))
            if tb >= bz:
                tb = bz
        return tb, oDim, xDim

    # Path 2: a single row group is too big -> tile xDim in 128-lane chunks.
    tb = tb_min
    to = oDim
    if xDim > LANE:
        chunks = block_budget // max(1, as_block_bytes(tb, oDim, LANE))
        tx = max(LANE, chunks * LANE)
        if tx >= xDim:
            tx = xDim
    else:
        tx = xDim

    # Path 3: still too big (huge oDim) -> tile oDim too.  `to` must be a
    # multiple of 128 so the (tb, to) output block stays lane-legal.
    if as_block_bytes(tb, to, tx) > block_budget and oDim > LANE:
        chunks = block_budget // max(1, as_block_bytes(tb, LANE, tx))
        to = max(LANE, chunks * LANE)
        if to >= oDim:
            to = oDim

    return tb, to, tx


# ---------------------------------------------------------------------------
# Kernel.
# ---------------------------------------------------------------------------
def _make_kernel(xDim, tx):
    mask_last_x_block = (xDim % tx) != 0  # padded lanes in the last x block

    def kernel(x_ref, as_ref, o_ref, acc_ref):
        # x_ref  : (tb, tx)         input dtype
        # as_ref : (tb, to, tx)     input dtype
        # o_ref  : (tb, to)         input dtype
        # acc_ref: (tb, to)         f32 accumulator, resident across k
        k = pl.program_id(2)

        @pl.when(k == 0)
        def _init():
            acc_ref[...] = jnp.zeros_like(acc_ref)

        a = as_ref[...]                              # (tb, to, tx)
        xv = x_ref[...].astype(jnp.float32)          # (tb, tx)

        if mask_last_x_block:
            col = k * tx + jax.lax.broadcasted_iota(jnp.int32, (1, tx), 1)
            lane_ok = col < xDim                     # (1, tx)
            xv = jnp.where(lane_ok, xv, 0.0)
            a = jnp.where(lane_ok[:, None, :], a, jnp.zeros((), a.dtype))

        # Lane reduction: accumulate 128-lane static slices on the VPU, then a
        # single cross-lane (XLU) reduce; f32 accumulation throughout.
        if tx > 128 and tx % 128 == 0:
            acc_l = a[..., :128].astype(jnp.float32)
            for c in range(1, tx // 128):
                acc_l = acc_l + a[..., c * 128:(c + 1) * 128].astype(jnp.float32)
            a_sum = jnp.sum(acc_l, axis=-1)          # (tb, to)
        else:
            a_sum = jnp.sum(a.astype(jnp.float32), axis=-1)

        x_sum = jnp.sum(xv, axis=-1, keepdims=True)  # (tb, 1)
        acc_ref[...] += a_sum + x_sum                # broadcast over oDim

        @pl.when(k == pl.num_programs(2) - 1)
        def _finalize():
            o_ref[...] = acc_ref[...].astype(o_ref.dtype)

    return kernel


# ---------------------------------------------------------------------------
# Wrapper.
# ---------------------------------------------------------------------------
def cadd_table_d2d3(x, As):
    """x: (bz, xDim), As: (bz, oDim, xDim) -> (bz, oDim)."""
    bz, xDim = x.shape
    bz2, oDim, xDim2 = As.shape
    assert bz2 == bz and xDim2 == xDim

    itemsize = jnp.dtype(x.dtype).itemsize
    block_budget, vmem_limit = _vmem_budget()
    tb, to, tx = _choose_tiles(bz, oDim, xDim, itemsize, block_budget)

    nb = pl.cdiv(bz, tb)
    no = pl.cdiv(oDim, to)
    nx = pl.cdiv(xDim, tx)

    kernel = _make_kernel(xDim, tx)

    out = pl.pallas_call(
        kernel,
        out_shape=jax.ShapeDtypeStruct((bz, oDim), x.dtype),
        grid_spec=pltpu.PrefetchScalarGridSpec(
            num_scalar_prefetch=0,
            grid=(nb, no, nx),
            in_specs=[
                pl.BlockSpec((tb, tx), lambda b, o, k: (b, k)),
                pl.BlockSpec((tb, to, tx), lambda b, o, k: (b, o, k)),
            ],
            out_specs=pl.BlockSpec((tb, to), lambda b, o, k: (b, o)),
            scratch_shapes=[pltpu.VMEM((tb, to), jnp.float32)],
        ),
        compiler_params=pltpu.CompilerParams(
            dimension_semantics=("parallel", "parallel", "arbitrary"),
            vmem_limit_bytes=vmem_limit,
        ),
    )(x, As)
    return out


if __name__ == "__main__":
    bz, xDim, oDim = 2, 32, 8

    key = jax.random.PRNGKey(0)
    k1, k2 = jax.random.split(key)
    x = jax.random.normal(k1, (bz, xDim), dtype=jnp.float32)
    As = jax.random.normal(k2, (bz, oDim, xDim), dtype=jnp.float32)

    out = cadd_table_d2d3(x, As)
    out = jax.block_until_ready(out)

    # Reference check in plain JAX (same math as the PyTorch forward).
    ref = jnp.sum(x[:, None, :] + As, axis=-1)
    assert out.shape == (bz, oDim)
    assert jnp.allclose(out, ref, atol=1e-5, rtol=1e-5)

    print("KERNEL_OK")
</pallas_src>

<mosaic_0001>
module attributes {stable_mosaic.version = 11 : i64} {
  func.func @kernel(%arg0: i32, %arg1: i32, %arg2: i32, %arg3: memref<2x32xf32, #tpu.memory_space<vmem>>, %arg4: memref<2x8x32xf32, #tpu.memory_space<vmem>>, %arg5: memref<2x8xf32, #tpu.memory_space<vmem>>, %arg6: memref<2x8xf32, #tpu.memory_space<vmem>>) attributes {dimension_semantics = [#tpu.dimension_semantics<parallel>, #tpu.dimension_semantics<parallel>, #tpu.dimension_semantics<arbitrary>], iteration_bounds = array<i64: 1, 1, 1>, scalar_prefetch = 0 : i64, scratch_operands = 1 : i64, tpu.core_type = #tpu.core_type<tc>, window_params = [{transform_indices = @transform_0, window_bounds = array<i64: 2, 32>}, {transform_indices = @transform_1, window_bounds = array<i64: 2, 8, 32>}, {transform_indices = @transform_2, window_bounds = array<i64: 2, 8>}]} {
    %c0_i32 = arith.constant 0 : i32
    %0 = arith.cmpi eq, %arg2, %c0_i32 : i32
    %1 = arith.extui %0 : i1 to i32
    %c0_i32_0 = arith.constant 0 : i32
    %2 = arith.cmpi ne, %1, %c0_i32_0 : i32
    scf.if %2 {
      %cst_12 = arith.constant 0.000000e+00 : f32
      %16 = vector.broadcast %cst_12 : f32 to vector<2x8xf32>
      %c0_13 = arith.constant 0 : index
      %c0_14 = arith.constant 0 : index
      %17 = vector.load %arg6[%c0_13, %c0_14] : memref<2x8xf32, #tpu.memory_space<vmem>>, vector<2x8xf32>
      tpu.vector_store %arg6[%c0_13, %c0_14], %16 {strides = array<i32>} : memref<2x8xf32, #tpu.memory_space<vmem>>, vector<2x8xf32>,
    } else {
    }
    %c0 = arith.constant 0 : index
    %c0_1 = arith.constant 0 : index
    %c0_2 = arith.constant 0 : index
    %3 = vector.load %arg4[%c0, %c0_1, %c0_2] : memref<2x8x32xf32, #tpu.memory_space<vmem>>, vector<2x8x32xf32>
    %c0_3 = arith.constant 0 : index
    %c0_4 = arith.constant 0 : index
    %4 = vector.load %arg3[%c0_3, %c0_4] : memref<2x32xf32, #tpu.memory_space<vmem>>, vector<2x32xf32>
    %cst = arith.constant dense<0.000000e+00> : vector<2x8xf32>
    %5 = vector.multi_reduction <add>, %3, %cst [2] : vector<2x8x32xf32> to vector<2x8xf32>
    %cst_5 = arith.constant dense<0.000000e+00> : vector<2xf32>
    %6 = vector.multi_reduction <add>, %4, %cst_5 [1] : vector<2x32xf32> to vector<2xf32>
    %7 = vector.shape_cast %6 : vector<2xf32> to vector<2x1xf32>
    %c0_6 = arith.constant 0 : index
    %c0_7 = arith.constant 0 : index
    %8 = vector.load %arg6[%c0_6, %c0_7] : memref<2x8xf32, #tpu.memory_space<vmem>>, vector<2x8xf32>
    %9 = vector.broadcast %7 : vector<2x1xf32> to vector<2x8xf32>
    %10 = arith.addf %5, %9 : vector<2x8xf32>
    %11 = arith.addf %8, %10 : vector<2x8xf32>
    %c0_8 = arith.constant 0 : index
    %c0_9 = arith.constant 0 : index
    %12 = vector.load %arg6[%c0_8, %c0_9] : memref<2x8xf32, #tpu.memory_space<vmem>>, vector<2x8xf32>
    tpu.vector_store %arg6[%c0_8, %c0_9], %11 {strides = array<i32>} : memref<2x8xf32, #tpu.memory_space<vmem>>, vector<2x8xf32>,
    %c0_i32_10 = arith.constant 0 : i32
    %13 = arith.cmpi eq, %arg2, %c0_i32_10 : i32
    %14 = arith.extui %13 : i1 to i32
    %c0_i32_11 = arith.constant 0 : i32
    %15 = arith.cmpi ne, %14, %c0_i32_11 : i32
    scf.if %15 {
      %c0_12 = arith.constant 0 : index
      %c0_13 = arith.constant 0 : index
      %16 = vector.load %arg6[%c0_12, %c0_13] : memref<2x8xf32, #tpu.memory_space<vmem>>, vector<2x8xf32>
      %c0_14 = arith.constant 0 : index
      %c0_15 = arith.constant 0 : index
      %17 = vector.load %arg5[%c0_14, %c0_15] : memref<2x8xf32, #tpu.memory_space<vmem>>, vector<2x8xf32>
      tpu.vector_store %arg5[%c0_14, %c0_15], %16 {strides = array<i32>} : memref<2x8xf32, #tpu.memory_space<vmem>>, vector<2x8xf32>,
    } else {
    }
    return
  }
  func.func @transform_0(%arg0: i32, %arg1: i32, %arg2: i32) -> (i32, i32) {
    %c0_i32 = arith.constant 0 : i32
    return %arg0, %arg2 : i32, i32
  }
  func.func @transform_1(%arg0: i32, %arg1: i32, %arg2: i32) -> (i32, i32, i32) {
    %c0_i32 = arith.constant 0 : i32
    return %arg0, %arg1, %arg2 : i32, i32, i32
  }
  func.func @transform_2(%arg0: i32, %arg1: i32, %arg2: i32) -> (i32, i32) {
    %c0_i32 = arith.constant 0 : i32
    return %arg0, %arg1 : i32, i32
  }
}

</mosaic_0001>

<llo_original>
// kernel: tpu_custom_call.1
$region0: #{tpu_custom_call.1}
  #allocation0 [shape = 'u32[]', space=smem, size = 0x4, offset = 0x4, fixed_abs, tag = 'smem constant byte address 0x4 - core index']
  #allocation1 [shape = 'u32[144,128]{1,0:T(1,128)}', space=vmem, size = 0x12000, scoped, tag = 'internal scratch']
  #allocation2 [shape = 'f32[2,8]{1,0:T(2,128)}', space=vmem, size = 0x400, scoped, tag = 'scratch operand']
  %s0 = inlined_call_operand.hbm [shape: f32[2,32], index: 0, kind: input, shape index: {}]
  %s1 = inlined_call_operand.hbm [shape: f32[2,8,32], index: 1, kind: input, shape index: {}]
  %s2 = inlined_call_operand.hbm [shape: f32[2,8], index: 2, kind: output, shape index: {}]
  %s3 = sld [smem:[#allocation0]]
  $region34: #{tpu_custom_call.1} parent=0
    _
  %s5 = ssub.s32 1, %s3
  %s6 = scalar_select 0, %s5, %s3
  $region1: #{tpu_custom_call.1} parent=0
    #allocation3 [shape = 'u8[1024]{0}', space=vmem, size = 0x400, scoped, tag = 'input window, operand 0, single buffered']
    #allocation4 [shape = 's32[1]{0}', space=sflag, size = 0x4, scoped, tag = 'scoped memory for tpu_custom_call.1']
    #allocation5 [shape = 's32[1]{0}', space=sflag, size = 0x4, scoped, tag = 'scoped memory for tpu_custom_call.1']
    #allocation6 [shape = 'u8[8192]{0}', space=vmem, size = 0x2000, scoped, tag = 'input window, operand 1, single buffered']
    #allocation7 [shape = 's32[1]{0}', space=sflag, size = 0x4, scoped, tag = 'scoped memory for tpu_custom_call.1']
    #allocation8 [shape = 'u8[1024]{0}', space=vmem, size = 0x400, scoped, tag = 'output window, operand 0, single buffered']
    %7 = vsyncpa [#allocation4], 0
    %8 = vsyncpa [#allocation7], 0
    %9 = vsyncpa [#allocation5], 0
    // Predicated region
    $region2: #{tpu_custom_call.1} parent=1 // pred_check
      _
    $region3: #{tpu_custom_call.1} parent=1 // pred_check_branch
      %11 = sbr.rel (0) target = $region5
    $region4: #{tpu_custom_call.1} parent=1 // pred_region
      %s13 = ssub.s32 32, 32
      %14 = vsyncadd [#allocation4], %s13
      %s16 = sshll.u32 [#allocation3], 4
      %s17 = int_to_ptr.vmem [resolvable:$true] %s16
      %19 = dma.hbm_to_vmem [thread:$0]  %s0, 32, %s17, [#allocation4]
    $region5: #{tpu_custom_call.1} parent=1 // pred_fallthru
      _
    // Predicated region
    $region6: #{tpu_custom_call.1} parent=1 // pred_check
      _
    $region7: #{tpu_custom_call.1} parent=1 // pred_check_branch
      %21 = sbr.rel (0) target = $region9
    $region8: #{tpu_custom_call.1} parent=1 // pred_region
      %s23 = ssub.s32 256, 256
      %24 = vsyncadd [#allocation7], %s23
      %s25 = sshll.u32 [#allocation6], 4
      %s26 = int_to_ptr.vmem [resolvable:$true] %s25
      %31 = dma.hbm_to_vmem [thread:$0]  %s1, 256, %s26, [#allocation7], 128, 128, 8
    $region9: #{tpu_custom_call.1} parent=1 // pred_fallthru
      _
    // Predicated region
    $region10: #{tpu_custom_call.1} parent=1 // pred_check
      _
    $region11: #{tpu_custom_call.1} parent=1 // pred_check_branch
      %33 = sbr.rel (0) target = $region13
    $region12: #{tpu_custom_call.1} parent=1 // pred_region
      %34 = dma.done [#allocation4], 32
    $region13: #{tpu_custom_call.1} parent=1 // pred_fallthru
      _
    // Predicated region
    $region14: #{tpu_custom_call.1} parent=1 // pred_check
      _
    $region15: #{tpu_custom_call.1} parent=1 // pred_check_branch
      %36 = sbr.rel (0) target = $region17
    $region16: #{tpu_custom_call.1} parent=1 // pred_region
      %37 = dma.done [#allocation7], 256
    $region17: #{tpu_custom_call.1} parent=1 // pred_fallthru
      _
    %p38 = scmp.eq.s32.totalorder 0, 0
    // Predicated region
    $region18: #{tpu_custom_call.1} parent=1 // pred_check
      %p39 = pneg %p38
    $region19: #{tpu_custom_call.1} parent=1 // pred_check_branch
      %41 = sbr.rel (%p39) target = $region21
    $region20: #{tpu_custom_call.1} parent=1 // pred_region
      %vm42 = vcmask 58368
      %43 = vst.msk [vmem:[#allocation2] sm:$0x3] %vm42, 0.0
    $region21: #{tpu_custom_call.1} parent=1 // pred_fallthru
      _
    %v44 = vld [vmem:[#allocation6] sm:$0xff]
    %v45 = vld [vmem:[#allocation6 + $0x8] sm:$0xff]
    %v46 = vld [vmem:[#allocation3] sm:$0x3]
    %vm47 = vcmask 261120
    %v48 = vsel %vm47, %v44, 0.0
    %49 = vadd.xlane.f32.xlu0 %v48
    %v50 = vpop.xlane.xlu0 %49
    %v51 = vsel %vm47, %v45, 0.0
    %52 = vadd.xlane.f32.xlu0 %v51
    %v53 = vpop.xlane.xlu0 %52
    %vm54 = vcmask 254976
    %v55 = vsel %vm54, %v46, 0.0
    %56 = vadd.xlane.f32.xlu0 %v55
    %v57 = vpop.xlane.xlu0 %56
    %v58 = vld [vmem:[#allocation2] sm:$0x3]
    %v60 = vlaneseq
    %v61 = vshrl.u32 %v60, 7
    %v62 = vsub.s32 0, %v61
    %v63 = vrot.slane %v57, %v62
    %v64 = vlaneseq
    %v65 = vshrl.u32 %v64, 7
    %v66 = vsub.s32 1, %v65
    %v67 = vrot.slane %v57, %v66
    %v70 = vadd.f32 %v50, %v63
    %v71 = vadd.f32 %v53, %v67
    %74 = vset.pattern.permute.xlu0 0
    %75 = vperm.xlu0 %74, %v70
    %v76 = vpop.permute.xlu0 %75
    %77 = vset.pattern.permute.xlu0 0
    %78 = vperm.xlu0 %77, %v71
    %v79 = vpop.permute.xlu0 %78
    %v80 = vlaneseq
    %v81 = vand.u32 %v80, 127
    %v82 = vlaneseq
    %v83 = vshrl.u32 %v82, 7
    %v84 = vsub.s32 %v81, %v83
    %v85 = vrot.slane %v76, %v84
    %v86 = vlaneseq
    %v87 = vshrl.u32 %v86, 7
    %v88 = vsub.s32 %v81, %v87
    %v89 = vrot.slane %v79, %v88
    %vm90 = vcmask 1041409
    %v91 = vsel %vm90, %v89, %v85
    %v93 = vadd.f32 %v58, %v91
    %vm94 = vcmask 58368
    %95 = vst.msk [vmem:[#allocation2] sm:$0x3] %vm94, %v93
    // Predicated region
    $region22: #{tpu_custom_call.1} parent=1 // pred_check
      %p96 = pneg %p38
    $region23: #{tpu_custom_call.1} parent=1 // pred_check_branch
      %98 = sbr.rel (%p96) target = $region25
    $region24: #{tpu_custom_call.1} parent=1 // pred_region
      %v99 = vld [vmem:[#allocation2] sm:$0x3]
      %100 = vst.msk [vmem:[#allocation8] sm:$0x3] %vm94, %v99
    $region25: #{tpu_custom_call.1} parent=1 // pred_fallthru
      _
    // Predicated region
    $region26: #{tpu_custom_call.1} parent=1 // pred_check
      _
    $region27: #{tpu_custom_call.1} parent=1 // pred_check_branch
      %102 = sbr.rel (0) target = $region29
    $region28: #{tpu_custom_call.1} parent=1 // pred_region
      %s104 = ssub.s32 32, 32
      %105 = vsyncadd [#allocation5], %s104
      %s107 = sshll.u32 [#allocation8], 4
      %s108 = int_to_ptr.vmem [resolvable:$true] %s107
      %110 = dma.vmem_to_hbm [thread:$0]  %s108, 32, %s2, [#allocation5]
    $region29: #{tpu_custom_call.1} parent=1 // pred_fallthru
      _
    // Predicated region
    $region30: #{tpu_custom_call.1} parent=1 // pred_check
      _
    $region31: #{tpu_custom_call.1} parent=1 // pred_check_branch
      %112 = sbr.rel (0) target = $region33
    $region32: #{tpu_custom_call.1} parent=1 // pred_region
      %113 = dma.done [#allocation5], 32
    $region33: #{tpu_custom_call.1} parent=1 // pred_fallthru
      _
    %114 = vsyncpa [#allocation4], 1
    %115 = vsyncpa [#allocation7], 1
    %116 = vsyncpa [#allocation5], 1

</llo_original>
